<compile_context>
chip_gen: v7x
topology: tpu7x:2x2x1
jax: 0.10.0
libtpu: 0.0.40
codegen_flags: <defaults>
</compile_context>

<pallas_src>
import functools

import jax
import jax.numpy as jnp
import numpy as np
from jax import lax
from jax.experimental import pallas as pl
from jax.experimental.pallas import tpu as pltpu


def _spike_conv_kernel(x_ref, w_ref, m_ref, o_ref, p_ref, *, H, W, KH, KW):
    """All time-steps and batch items at once, as one fused block-diagonal matmul.

    x_ref: (G*Cin,  HW)      G = step*N; rows = (t, n, ci), lanes = flattened (h, w)
    w_ref: (G*Cout, K+1)     K = KH*KW*G*Cin; block-diagonal over (t, n); last col = bias
    m_ref: (KH*KW,  HW)      constant {0,1} boundary masks at destination coordinates
    o_ref: (G*Cout, HW)      lane-dense output (HW multiple of 128 -> unmasked stores)
    p_ref: (K+1,    HW)      VMEM scratch: im2col patches + trailing ones row (for bias)
    """
    HW = H * W
    rows = x_ref.shape[0]                      # G*Cin
    x = x_ref[...]
    masks = m_ref[...]                         # (KH*KW, HW)

    # im2col: tap (kh, kw) reads x[..., h+dh, w+dw] with dh = kh - KH//2, dw = kw - KW//2.
    # In the flat lane coordinate (h*W + w) that is a shift by s = dh*W + dw, done as an
    # XLU roll. NOTE: pltpu.roll follows jnp.roll's convention out[i] = x[(i - shift) % HW],
    # so shift = (-s) % HW gives out[i] = x[i + s]. The out-of-image halo AND the mod-HW
    # wraparound introduced by the roll are zeroed by the precomputed destination-side
    # mask — this IS the 'same' zero padding (no jnp.pad, no HBM round trip).
    for kh in range(KH):
        dh = kh - KH // 2
        for kw in range(KW):
            dw = kw - KW // 2
            t = kh * KW + kw
            s = dh * W + dw
            shifted = x if s == 0 else pltpu.roll(x, shift=(-s) % HW, axis=1)
            if dh == 0 and dw == 0:
                tap = shifted                            # center tap: mask is all-ones
            else:
                tap = shifted * masks[t:t + 1, :]        # (G*Cin, HW) * (1, HW) broadcast
            p_ref[pl.ds(t * rows, rows), :] = tap        # static, sublane-aligned store

    K = KH * KW * rows
    p_ref[pl.ds(K, 1), :] = jnp.ones((1, HW), x.dtype)   # ones row -> bias column of w

    # Single fused MXU matmul, f32 accumulate; bias is the (K+1)-th column of w_ref.
    o_ref[...] = jnp.dot(
        w_ref[...], p_ref[...], preferred_element_type=jnp.float32
    ).astype(o_ref.dtype)


def prepare_spike_conv_params(w, b, *, step, N, H, W):
    """One-time weight / mask prep (hoisted out of the per-call path; weights are static).

    w: [Cout, Cin, KH, KW] (PyTorch OIHW), b: [Cout].
    Returns:
      w_full: (step*N*Cout, KH*KW*step*N*Cin + 1)  block-diagonal over (t, n) + bias col
      masks:  (KH*KW, H*W)                         constant {0,1} boundary masks
    """
    w_np = np.asarray(w, np.float32)
    b_np = np.asarray(b, np.float32)
    Cout, Cin, KH, KW = w_np.shape
    G = step * N
    K = KH * KW * G * Cin

    # Block-diagonal over the G = step*N images so one plain matmul yields the whole
    # lane-dense (G*Cout, H*W) output in a single kernel invocation:
    #   w_full[g*Cout + co, (kh*KW+kw)*G*Cin + m*Cin + ci] = (g == m) * w[co, ci, kh, kw]
    # NOTE(scaling): (1 - 1/G) of w_full is zeros — fine for G = 4. If N grows beyond
    # ~8-16, switch to a per-image loop reusing the shared (Cout, KH*KW*Cin) weight
    # (or a batched dot_general) instead of growing K.
    w_full = np.zeros((G * Cout, K + 1), np.float32)
    for g in range(G):
        for kh in range(KH):
            for kw in range(KW):
                t = kh * KW + kw
                col = t * G * Cin + g * Cin
                w_full[g * Cout:(g + 1) * Cout, col:col + Cin] = w_np[:, :, kh, kw]
    w_full[:, K] = np.tile(b_np, G)              # bias folded in as the last column

    # Constant {0,1} boundary masks at *destination* (h, w) coordinates, one per tap.
    hh = np.arange(H)[:, None]
    ww = np.arange(W)[None, :]
    masks = np.zeros((KH * KW, H * W), np.float32)
    for kh in range(KH):
        dh = kh - KH // 2
        for kw in range(KW):
            dw = kw - KW // 2
            valid = (hh + dh >= 0) & (hh + dh < H) & (ww + dw >= 0) & (ww + dw < W)
            masks[kh * KW + kw] = valid.reshape(H * W).astype(np.float32)

    return jnp.asarray(w_full), jnp.asarray(masks)


@functools.partial(jax.jit, static_argnames=("kh", "kw"))
def spike_conv(x, w_full, masks, *, kh, kw):
    """x: [step, N, Cin, H, W]; w_full / masks from prepare_spike_conv_params."""
    T, N, Cin, H, W = x.shape
    KH, KW = kh, kw
    HW = H * W
    G = T * N
    Cout = w_full.shape[0] // G
    K = KH * KW * G * Cin
    assert w_full.shape == (G * Cout, K + 1)
    assert masks.shape == (KH * KW, HW)
    # Lane-dense layout assumptions (hold for the spec'd sizes, f32 8-sublane tiles).
    assert x.dtype == jnp.float32, "bf16 would need re-padded (16,128) min tiles"
    assert HW % 128 == 0 and (G * Cin) % 8 == 0 and (G * Cout) % 8 == 0

    # Activation path: pure metadata reshape — no transpose, no pad, no HBM copy.
    x2d = x.reshape(G * Cin, HW)

    cost = pl.CostEstimate(
        flops=2 * (G * Cout) * (K + 1) * HW,
        transcendentals=0,
        bytes_accessed=4 * (x2d.size + w_full.size + masks.size + G * Cout * HW),
    )

    kernel = functools.partial(_spike_conv_kernel, H=H, W=W, KH=KH, KW=KW)

    out = pl.pallas_call(
        kernel,
        out_shape=jax.ShapeDtypeStruct((G * Cout, HW), x.dtype),
        grid=(1,),  # single invocation: every time-step handled by the one fused matmul
        in_specs=[
            pl.BlockSpec((G * Cin, HW), lambda i: (0, 0)),
            pl.BlockSpec((G * Cout, K + 1), lambda i: (0, 0)),
            pl.BlockSpec((KH * KW, HW), lambda i: (0, 0)),
        ],
        out_specs=pl.BlockSpec((G * Cout, HW), lambda i: (0, 0)),
        scratch_shapes=[pltpu.VMEM((K + 1, HW), jnp.float32)],
        cost_estimate=cost,
    )(x2d, w_full, masks)

    # Back to PyTorch layout [step, N, Cout, H, W] — again a free reshape.
    return out.reshape(T, N, Cout, H, W)


def _reference(x, w, b):
    """Pure-JAX reference: per-step conv2d, stacked (mirrors the PyTorch loop)."""
    T = x.shape[0]
    outs = []
    for t in range(T):
        yt = lax.conv_general_dilated(
            x[t], w, window_strides=(1, 1), padding="SAME",
            dimension_numbers=("NCHW", "OIHW", "NCHW"),
        ) + b[None, :, None, None]
        outs.append(yt)
    return jnp.stack(outs)


if __name__ == "__main__":
    step, N, Cin, Cout, H, W, Ksz = 2, 2, 4, 8, 16, 16, 3

    key = jax.random.PRNGKey(0)
    kx, kw_, kb = jax.random.split(key, 3)

    # Deterministic "conv" parameters (kaiming-ish scale), PyTorch OIHW layout.
    fan_in = Cin * Ksz * Ksz
    w = jax.random.normal(kw_, (Cout, Cin, Ksz, Ksz), jnp.float32) / np.sqrt(fan_in)
    b = jax.random.normal(kb, (Cout,), jnp.float32) * 0.01

    # Input: [step, N, Cin, H, W]
    x = jax.random.normal(kx, (step, N, Cin, H, W), jnp.float32)

    # One-time weight/mask prep (static weights) — outside the per-call / jit path.
    w_full, masks = prepare_spike_conv_params(w, b, step=step, N=N, H=H, W=W)

    y = spike_conv(x, w_full, masks, kh=Ksz, kw=Ksz)
    y = jax.block_until_ready(y)

    y_ref = _reference(x, w, b)
    np.testing.assert_allclose(np.asarray(y), np.asarray(y_ref), rtol=1e-4, atol=1e-4)
    assert y.shape == (step, N, Cout, H, W)

    print("KERNEL_OK")
</pallas_src>

<mosaic_0001>
module attributes {stable_mosaic.version = 11 : i64} {
  func.func @_spike_conv_kernel(%arg0: i32, %arg1: memref<16x256xf32, #tpu.memory_space<vmem>>, %arg2: memref<32x145xf32, #tpu.memory_space<vmem>>, %arg3: memref<9x256xf32, #tpu.memory_space<vmem>>, %arg4: memref<32x256xf32, #tpu.memory_space<vmem>>, %arg5: memref<145x256xf32, #tpu.memory_space<vmem>>) attributes {dimension_semantics = [#tpu.dimension_semantics<arbitrary>], iteration_bounds = array<i64: 1>, scalar_prefetch = 0 : i64, scratch_operands = 1 : i64, tpu.core_type = #tpu.core_type<tc>, window_params = [{pipeline_mode = #tpu.pipeline_mode<synchronous>, transform_indices = @transform_0, window_bounds = array<i64: 16, 256>}, {pipeline_mode = #tpu.pipeline_mode<synchronous>, transform_indices = @transform_1, window_bounds = array<i64: 32, 145>}, {pipeline_mode = #tpu.pipeline_mode<synchronous>, transform_indices = @transform_2, window_bounds = array<i64: 9, 256>}, {pipeline_mode = #tpu.pipeline_mode<synchronous>, transform_indices = @transform_3, window_bounds = array<i64: 32, 256>}]} {
    %c0 = arith.constant 0 : index
    %c0_0 = arith.constant 0 : index
    %0 = vector.load %arg1[%c0, %c0_0] : memref<16x256xf32, #tpu.memory_space<vmem>>, vector<16x256xf32>
    %c0_1 = arith.constant 0 : index
    %c0_2 = arith.constant 0 : index
    %1 = vector.load %arg3[%c0_1, %c0_2] : memref<9x256xf32, #tpu.memory_space<vmem>>, vector<9x256xf32>
    %c17_i32 = arith.constant 17 : i32
    %2 = tpu.dynamic_rotate %0 by %c17_i32 dim 1 : vector<16x256xf32>, i32 -> vector<16x256xf32>
    %3 = vector.extract_strided_slice %1 {offsets = [0, 0], sizes = [1, 256], strides = [1, 1]} : vector<9x256xf32> to vector<1x256xf32>
    %4 = vector.broadcast %3 : vector<1x256xf32> to vector<16x256xf32>
    %5 = arith.mulf %2, %4 : vector<16x256xf32>
    %c0_3 = arith.constant 0 : index
    %c0_4 = arith.constant 0 : index
    %6 = vector.load %arg5[%c0_3, %c0_4] : memref<145x256xf32, #tpu.memory_space<vmem>>, vector<16x256xf32>
    tpu.vector_store %arg5[%c0_3, %c0_4], %5 {strides = array<i32>} : memref<145x256xf32, #tpu.memory_space<vmem>>, vector<16x256xf32>,
    %c16_i32 = arith.constant 16 : i32
    %7 = tpu.dynamic_rotate %0 by %c16_i32 dim 1 : vector<16x256xf32>, i32 -> vector<16x256xf32>
    %8 = vector.extract_strided_slice %1 {offsets = [1, 0], sizes = [1, 256], strides = [1, 1]} : vector<9x256xf32> to vector<1x256xf32>
    %9 = vector.broadcast %8 : vector<1x256xf32> to vector<16x256xf32>
    %10 = arith.mulf %7, %9 : vector<16x256xf32>
    %c16 = arith.constant 16 : index
    %c0_5 = arith.constant 0 : index
    %11 = vector.load %arg5[%c16, %c0_5] : memref<145x256xf32, #tpu.memory_space<vmem>>, vector<16x256xf32>
    tpu.vector_store %arg5[%c16, %c0_5], %10 {strides = array<i32>} : memref<145x256xf32, #tpu.memory_space<vmem>>, vector<16x256xf32>,
    %c15_i32 = arith.constant 15 : i32
    %12 = tpu.dynamic_rotate %0 by %c15_i32 dim 1 : vector<16x256xf32>, i32 -> vector<16x256xf32>
    %13 = vector.extract_strided_slice %1 {offsets = [2, 0], sizes = [1, 256], strides = [1, 1]} : vector<9x256xf32> to vector<1x256xf32>
    %14 = vector.broadcast %13 : vector<1x256xf32> to vector<16x256xf32>
    %15 = arith.mulf %12, %14 : vector<16x256xf32>
    %c32 = arith.constant 32 : index
    %c0_6 = arith.constant 0 : index
    %16 = vector.load %arg5[%c32, %c0_6] : memref<145x256xf32, #tpu.memory_space<vmem>>, vector<16x256xf32>
    tpu.vector_store %arg5[%c32, %c0_6], %15 {strides = array<i32>} : memref<145x256xf32, #tpu.memory_space<vmem>>, vector<16x256xf32>,
    %c1_i32 = arith.constant 1 : i32
    %17 = tpu.dynamic_rotate %0 by %c1_i32 dim 1 : vector<16x256xf32>, i32 -> vector<16x256xf32>
    %18 = vector.extract_strided_slice %1 {offsets = [3, 0], sizes = [1, 256], strides = [1, 1]} : vector<9x256xf32> to vector<1x256xf32>
    %19 = vector.broadcast %18 : vector<1x256xf32> to vector<16x256xf32>
    %20 = arith.mulf %17, %19 : vector<16x256xf32>
    %c48 = arith.constant 48 : index
    %c0_7 = arith.constant 0 : index
    %21 = vector.load %arg5[%c48, %c0_7] : memref<145x256xf32, #tpu.memory_space<vmem>>, vector<16x256xf32>
    tpu.vector_store %arg5[%c48, %c0_7], %20 {strides = array<i32>} : memref<145x256xf32, #tpu.memory_space<vmem>>, vector<16x256xf32>,
    %c64 = arith.constant 64 : index
    %c0_8 = arith.constant 0 : index
    %22 = vector.load %arg5[%c64, %c0_8] : memref<145x256xf32, #tpu.memory_space<vmem>>, vector<16x256xf32>
    tpu.vector_store %arg5[%c64, %c0_8], %0 {strides = array<i32>} : memref<145x256xf32, #tpu.memory_space<vmem>>, vector<16x256xf32>,
    %c255_i32 = arith.constant 255 : i32
    %23 = tpu.dynamic_rotate %0 by %c255_i32 dim 1 : vector<16x256xf32>, i32 -> vector<16x256xf32>
    %24 = vector.extract_strided_slice %1 {offsets = [5, 0], sizes = [1, 256], strides = [1, 1]} : vector<9x256xf32> to vector<1x256xf32>
    %25 = vector.broadcast %24 : vector<1x256xf32> to vector<16x256xf32>
    %26 = arith.mulf %23, %25 : vector<16x256xf32>
    %c80 = arith.constant 80 : index
    %c0_9 = arith.constant 0 : index
    %27 = vector.load %arg5[%c80, %c0_9] : memref<145x256xf32, #tpu.memory_space<vmem>>, vector<16x256xf32>
    tpu.vector_store %arg5[%c80, %c0_9], %26 {strides = array<i32>} : memref<145x256xf32, #tpu.memory_space<vmem>>, vector<16x256xf32>,
    %c241_i32 = arith.constant 241 : i32
    %28 = tpu.dynamic_rotate %0 by %c241_i32 dim 1 : vector<16x256xf32>, i32 -> vector<16x256xf32>
    %29 = vector.extract_strided_slice %1 {offsets = [6, 0], sizes = [1, 256], strides = [1, 1]} : vector<9x256xf32> to vector<1x256xf32>
    %30 = vector.broadcast %29 : vector<1x256xf32> to vector<16x256xf32>
    %31 = arith.mulf %28, %30 : vector<16x256xf32>
    %c96 = arith.constant 96 : index
    %c0_10 = arith.constant 0 : index
    %32 = vector.load %arg5[%c96, %c0_10] : memref<145x256xf32, #tpu.memory_space<vmem>>, vector<16x256xf32>
    tpu.vector_store %arg5[%c96, %c0_10], %31 {strides = array<i32>} : memref<145x256xf32, #tpu.memory_space<vmem>>, vector<16x256xf32>,
    %c240_i32 = arith.constant 240 : i32
    %33 = tpu.dynamic_rotate %0 by %c240_i32 dim 1 : vector<16x256xf32>, i32 -> vector<16x256xf32>
    %34 = vector.extract_strided_slice %1 {offsets = [7, 0], sizes = [1, 256], strides = [1, 1]} : vector<9x256xf32> to vector<1x256xf32>
    %35 = vector.broadcast %34 : vector<1x256xf32> to vector<16x256xf32>
    %36 = arith.mulf %33, %35 : vector<16x256xf32>
    %c112 = arith.constant 112 : index
    %c0_11 = arith.constant 0 : index
    %37 = vector.load %arg5[%c112, %c0_11] : memref<145x256xf32, #tpu.memory_space<vmem>>, vector<16x256xf32>
    tpu.vector_store %arg5[%c112, %c0_11], %36 {strides = array<i32>} : memref<145x256xf32, #tpu.memory_space<vmem>>, vector<16x256xf32>,
    %c239_i32 = arith.constant 239 : i32
    %38 = tpu.dynamic_rotate %0 by %c239_i32 dim 1 : vector<16x256xf32>, i32 -> vector<16x256xf32>
    %39 = vector.extract_strided_slice %1 {offsets = [8, 0], sizes = [1, 256], strides = [1, 1]} : vector<9x256xf32> to vector<1x256xf32>
    %40 = vector.broadcast %39 : vector<1x256xf32> to vector<16x256xf32>
    %41 = arith.mulf %38, %40 : vector<16x256xf32>
    %c128 = arith.constant 128 : index
    %c0_12 = arith.constant 0 : index
    %42 = vector.load %arg5[%c128, %c0_12] : memref<145x256xf32, #tpu.memory_space<vmem>>, vector<16x256xf32>
    tpu.vector_store %arg5[%c128, %c0_12], %41 {strides = array<i32>} : memref<145x256xf32, #tpu.memory_space<vmem>>, vector<16x256xf32>,
    %cst = arith.constant 1.000000e+00 : f32
    %43 = vector.broadcast %cst : f32 to vector<1x256xf32>
    %c144 = arith.constant 144 : index
    %c0_13 = arith.constant 0 : index
    %44 = vector.load %arg5[%c144, %c0_13] : memref<145x256xf32, #tpu.memory_space<vmem>>, vector<1x256xf32>
    tpu.vector_store %arg5[%c144, %c0_13], %43 {strides = array<i32>} : memref<145x256xf32, #tpu.memory_space<vmem>>, vector<1x256xf32>,
    %c0_14 = arith.constant 0 : index
    %c0_15 = arith.constant 0 : index
    %45 = vector.load %arg2[%c0_14, %c0_15] : memref<32x145xf32, #tpu.memory_space<vmem>>, vector<32x145xf32>
    %c0_16 = arith.constant 0 : index
    %c0_17 = arith.constant 0 : index
    %46 = vector.load %arg5[%c0_16, %c0_17] : memref<145x256xf32, #tpu.memory_space<vmem>>, vector<145x256xf32>
    %cst_18 = arith.constant dense<0.000000e+00> : vector<32x256xf32>
    %47 = tpu.matmul %45, %46, %cst_18 {dimension_numbers = #tpu.dot_dimension_numbers<[1], [0], [0], [1], [0, 0, 1, 1], [], []>} : vector<32x145xf32>, vector<145x256xf32>, vector<32x256xf32> -> vector<32x256xf32>
    %c0_19 = arith.constant 0 : index
    %c0_20 = arith.constant 0 : index
    %48 = vector.load %arg4[%c0_19, %c0_20] : memref<32x256xf32, #tpu.memory_space<vmem>>, vector<32x256xf32>
    tpu.vector_store %arg4[%c0_19, %c0_20], %47 {strides = array<i32>} : memref<32x256xf32, #tpu.memory_space<vmem>>, vector<32x256xf32>,
    return
  }
  func.func @transform_0(%arg0: i32) -> (i32, i32) {
    %c0_i32 = arith.constant 0 : i32
    %c0_i32_0 = arith.constant 0 : i32
    %c0_i32_1 = arith.constant 0 : i32
    return %c0_i32, %c0_i32_0 : i32, i32
  }
  func.func @transform_1(%arg0: i32) -> (i32, i32) {
    %c0_i32 = arith.constant 0 : i32
    %c0_i32_0 = arith.constant 0 : i32
    %c0_i32_1 = arith.constant 0 : i32
    return %c0_i32, %c0_i32_0 : i32, i32
  }
  func.func @transform_2(%arg0: i32) -> (i32, i32) {
    %c0_i32 = arith.constant 0 : i32
    %c0_i32_0 = arith.constant 0 : i32
    %c0_i32_1 = arith.constant 0 : i32
    return %c0_i32, %c0_i32_0 : i32, i32
  }
  func.func @transform_3(%arg0: i32) -> (i32, i32) {
    %c0_i32 = arith.constant 0 : i32
    %c0_i32_0 = arith.constant 0 : i32
    %c0_i32_1 = arith.constant 0 : i32
    return %c0_i32, %c0_i32_0 : i32, i32
  }
}

</mosaic_0001>

<llo_original>
// kernel: spike_conv.1
$region0: #{spike_conv.1}
  #allocation0 [shape = 'u32[]', space=smem, size = 0x4, offset = 0x4, fixed_abs, tag = 'smem constant byte address 0x4 - core index']
  #allocation1 [shape = 'u32[144,128]{1,0:T(1,128)}', space=vmem, size = 0x12000, scoped, tag = 'internal scratch']
  #allocation2 [shape = 'f32[145,256]{1,0:T(8,128)}', space=vmem, size = 0x26000, scoped, tag = 'scratch operand']
  %s0 = inlined_call_operand.vmem [shape: f32[16,256], index: 0, kind: input, shape index: {}]
  %s1 = inlined_call_operand.vmem [shape: f32[32,145], index: 1, kind: input, shape index: {}]
  %s2 = inlined_call_operand.vmem [shape: f32[9,256], index: 2, kind: input, shape index: {}]
  %s3 = inlined_call_operand.vmem [shape: f32[32,256], index: 3, kind: output, shape index: {}]
  %s4 = sld [smem:[#allocation0]]
  $region22: #{spike_conv.1} parent=0
    _
  %s6 = ssub.s32 1, %s4
  %s7 = scalar_select 0, %s6, %s4
  // Predicated region
  $region2: #{spike_conv.1} parent=0 // pred_check
    _
  $region3: #{spike_conv.1} parent=0 // pred_check_branch
    %9 = sbr.rel (0) target = $region5
  $region4: #{spike_conv.1} parent=0 // pred_region
    _
  $region5: #{spike_conv.1} parent=0 // pred_fallthru
    _
  // Predicated region
  $region6: #{spike_conv.1} parent=0 // pred_check
    _
  $region7: #{spike_conv.1} parent=0 // pred_check_branch
    %11 = sbr.rel (0) target = $region9
  $region8: #{spike_conv.1} parent=0 // pred_region
    _
  $region9: #{spike_conv.1} parent=0 // pred_fallthru
    _
  // Predicated region
  $region10: #{spike_conv.1} parent=0 // pred_check
    _
  $region11: #{spike_conv.1} parent=0 // pred_check_branch
    %13 = sbr.rel (0) target = $region13
  $region12: #{spike_conv.1} parent=0 // pred_region
    _
  $region13: #{spike_conv.1} parent=0 // pred_fallthru
    _
  %v14 = vld [vmem:[%s0] sm:$0xff]
  %v15 = vld [vmem:[%s0 + $0x8] sm:$0xff]
  %v16 = vld [vmem:[%s0 + $0x10] sm:$0xff]
  %v17 = vld [vmem:[%s0 + $0x18] sm:$0xff]
  %v18 = vld [vmem:[%s2] sm:$0xff]
  %v19 = vld [vmem:[%s2 + $0x8] sm:$0xff]
  %v20 = vld [vmem:[%s2 + $0x10] sm:$0x1]
  %v21 = vld [vmem:[%s2 + $0x18] sm:$0x1]
  %22 = vrot.lane.b32.xlu0 %v14, 17
  %v23 = vpop.permute.xlu0 %22
  %24 = vrot.lane.b32.xlu0 %v16, 17
  %v25 = vpop.permute.xlu0 %24
  %26 = vrot.lane.b32.xlu0 %v15, 17
  %v27 = vpop.permute.xlu0 %26
  %28 = vrot.lane.b32.xlu0 %v17, 17
  %v29 = vpop.permute.xlu0 %28
  %v30 = vlaneseq
  %v31 = vand.u32 %v30, 127
  %vm32 = vcmp.lt.s32.totalorder %v31, 17
  %v33 = vsel %vm32, %v23, %v27
  %v34 = vsel %vm32, %v25, %v29
  %v35 = vsel %vm32, %v27, %v23
  %v36 = vsel %vm32, %v29, %v25
  %v37 = vlaneseq
  %v38 = vshrl.u32 %v37, 7
  %v39 = vsub.s32 0, %v38
  %v40 = vrot.slane %v18, %v39
  %v41 = vlaneseq
  %v42 = vshrl.u32 %v41, 7
  %v43 = vsub.s32 0, %v42
  %v44 = vrot.slane %v19, %v43
  %v45 = vmul.f32 %v35, %v40
  %v46 = vmul.f32 %v33, %v44
  %v47 = vmul.f32 %v36, %v40
  %v48 = vmul.f32 %v34, %v44
  %49 = vst [vmem:[#allocation2] sm:$0xff] %v45
  %50 = vst [vmem:[#allocation2 + $0x8] sm:$0xff] %v46
  %51 = vst [vmem:[#allocation2 + $0x10] sm:$0xff] %v47
  %52 = vst [vmem:[#allocation2 + $0x18] sm:$0xff] %v48
  %53 = vrot.lane.b32.xlu0 %v14, 16
  %v54 = vpop.permute.xlu0 %53
  %55 = vrot.lane.b32.xlu0 %v16, 16
  %v56 = vpop.permute.xlu0 %55
  %57 = vrot.lane.b32.xlu0 %v15, 16
  %v58 = vpop.permute.xlu0 %57
  %59 = vrot.lane.b32.xlu0 %v17, 16
  %v60 = vpop.permute.xlu0 %59
  %vm61 = vcmp.lt.s32.totalorder %v31, 16
  %v62 = vsel %vm61, %v54, %v58
  %v63 = vsel %vm61, %v56, %v60
  %v64 = vsel %vm61, %v58, %v54
  %v65 = vsel %vm61, %v60, %v56
  %v66 = vlaneseq
  %v67 = vshrl.u32 %v66, 7
  %v68 = vsub.s32 1, %v67
  %v69 = vrot.slane %v18, %v68
  %v70 = vlaneseq
  %v71 = vshrl.u32 %v70, 7
  %v72 = vsub.s32 1, %v71
  %v73 = vrot.slane %v19, %v72
  %v74 = vmul.f32 %v64, %v69
  %v75 = vmul.f32 %v62, %v73
  %v76 = vmul.f32 %v65, %v69
  %v77 = vmul.f32 %v63, %v73
  %78 = vst [vmem:[#allocation2 + $0x20] sm:$0xff] %v74
  %79 = vst [vmem:[#allocation2 + $0x28] sm:$0xff] %v75
  %80 = vst [vmem:[#allocation2 + $0x30] sm:$0xff] %v76
  %81 = vst [vmem:[#allocation2 + $0x38] sm:$0xff] %v77
  %82 = vrot.lane.b32.xlu0 %v14, 15
  %v83 = vpop.permute.xlu0 %82
  %84 = vrot.lane.b32.xlu0 %v16, 15
  %v85 = vpop.permute.xlu0 %84
  %86 = vrot.lane.b32.xlu0 %v15, 15
  %v87 = vpop.permute.xlu0 %86
  %88 = vrot.lane.b32.xlu0 %v17, 15
  %v89 = vpop.permute.xlu0 %88
  %vm90 = vcmp.lt.s32.totalorder %v31, 15
  %v91 = vsel %vm90, %v83, %v87
  %v92 = vsel %vm90, %v85, %v89
  %v93 = vsel %vm90, %v87, %v83
  %v94 = vsel %vm90, %v89, %v85
  %v95 = vlaneseq
  %v96 = vshrl.u32 %v95, 7
  %v97 = vsub.s32 2, %v96
  %v98 = vrot.slane %v18, %v97
  %v99 = vlaneseq
  %v100 = vshrl.u32 %v99, 7
  %v101 = vsub.s32 2, %v100
  %v102 = vrot.slane %v19, %v101
  %v103 = vmul.f32 %v93, %v98
  %v104 = vmul.f32 %v91, %v102
  %v105 = vmul.f32 %v94, %v98
  %v106 = vmul.f32 %v92, %v102
  %107 = vst [vmem:[#allocation2 + $0x40] sm:$0xff] %v103
  %108 = vst [vmem:[#allocation2 + $0x48] sm:$0xff] %v104
  %109 = vst [vmem:[#allocation2 + $0x50] sm:$0xff] %v105
  %110 = vst [vmem:[#allocation2 + $0x58] sm:$0xff] %v106
  %111 = vrot.lane.b32.xlu0 %v14, 1
  %v112 = vpop.permute.xlu0 %111
  %113 = vrot.lane.b32.xlu0 %v16, 1
  %v114 = vpop.permute.xlu0 %113
  %115 = vrot.lane.b32.xlu0 %v15, 1
  %v116 = vpop.permute.xlu0 %115
  %117 = vrot.lane.b32.xlu0 %v17, 1
  %v118 = vpop.permute.xlu0 %117
  %vm119 = vcmp.lt.s32.totalorder %v31, 1
  %v120 = vsel %vm119, %v112, %v116
  %v121 = vsel %vm119, %v114, %v118
  %v122 = vsel %vm119, %v116, %v112
  %v123 = vsel %vm119, %v118, %v114
  %v124 = vlaneseq
  %v125 = vshrl.u32 %v124, 7
  %v126 = vsub.s32 3, %v125
  %v127 = vrot.slane %v18, %v126
  %v128 = vlaneseq
  %v129 = vshrl.u32 %v128, 7
  %v130 = vsub.s32 3, %v129
  %v131 = vrot.slane %v19, %v130
  %v132 = vmul.f32 %v122, %v127
  %v133 = vmul.f32 %v120, %v131
  %v134 = vmul.f32 %v123, %v127
  %v135 = vmul.f32 %v121, %v131
  %136 = vst [vmem:[#allocation2 + $0x60] sm:$0xff] %v132
  %137 = vst [vmem:[#allocation2 + $0x68] sm:$0xff] %v133
  %138 = vst [vmem:[#allocation2 + $0x70] sm:$0xff] %v134
  %139 = vst [vmem:[#allocation2 + $0x78] sm:$0xff] %v135
  %140 = vst [vmem:[#allocation2 + $0x80] sm:$0xff] %v14
  %141 = vst [vmem:[#allocation2 + $0x88] sm:$0xff] %v15
  %142 = vst [vmem:[#allocation2 + $0x90] sm:$0xff] %v16
  %143 = vst [vmem:[#allocation2 + $0x98] sm:$0xff] %v17
  %144 = vrot.lane.b32.xlu0 %v14, 127
  %v145 = vpop.permute.xlu0 %144
  %146 = vrot.lane.b32.xlu0 %v16, 127
  %v147 = vpop.permute.xlu0 %146
  %148 = vrot.lane.b32.xlu0 %v15, 127
  %v149 = vpop.permute.xlu0 %148
  %150 = vrot.lane.b32.xlu0 %v17, 127
  %v151 = vpop.permute.xlu0 %150
  %vm152 = vcmp.lt.s32.totalorder %v31, 127
  %v153 = vsel %vm152, %v145, %v149
  %v154 = vsel %vm152, %v147, %v151
  %v155 = vsel %vm152, %v149, %v145
  %v156 = vsel %vm152, %v151, %v147
  %v157 = vlaneseq
  %v158 = vshrl.u32 %v157, 7
  %v159 = vsub.s32 5, %v158
  %v160 = vrot.slane %v18, %v159
  %v161 = vlaneseq
  %v162 = vshrl.u32 %v161, 7
  %v163 = vsub.s32 5, %v162
  %v164 = vrot.slane %v19, %v163
  %v165 = vmul.f32 %v153, %v160
  %v166 = vmul.f32 %v155, %v164
  %v167 = vmul.f32 %v154, %v160
  %v168 = vmul.f32 %v156, %v164
  %169 = vst [vmem:[#allocation2 + $0xa0] sm:$0xff] %v165
  %170 = vst [vmem:[#allocation2 + $0xa8] sm:$0xff] %v166
  %171 = vst [vmem:[#allocation2 + $0xb0] sm:$0xff] %v167
  %172 = vst [vmem:[#allocation2 + $0xb8] sm:$0xff] %v168
  %173 = vrot.lane.b32.xlu0 %v14, 113
  %v174 = vpop.permute.xlu0 %173
  %175 = vrot.lane.b32.xlu0 %v16, 113
  %v176 = vpop.permute.xlu0 %175
  %177 = vrot.lane.b32.xlu0 %v15, 113
  %v178 = vpop.permute.xlu0 %177
  %179 = vrot.lane.b32.xlu0 %v17, 113
  %v180 = vpop.permute.xlu0 %179
  %vm181 = vcmp.lt.s32.totalorder %v31, 113
  %v182 = vsel %vm181, %v174, %v178
  %v183 = vsel %vm181, %v176, %v180
  %v184 = vsel %vm181, %v178, %v174
  %v185 = vsel %vm181, %v180, %v176
  %v186 = vlaneseq
  %v187 = vshrl.u32 %v186, 7
  %v188 = vsub.s32 6, %v187
  %v189 = vrot.slane %v18, %v188
  %v190 = vlaneseq
  %v191 = vshrl.u32 %v190, 7
  %v192 = vsub.s32 6, %v191
  %v193 = vrot.slane %v19, %v192
  %v194 = vmul.f32 %v182, %v189
  %v195 = vmul.f32 %v184, %v193
  %v196 = vmul.f32 %v183, %v189
  %v197 = vmul.f32 %v185, %v193
  %198 = vst [vmem:[#allocation2 + $0xc0] sm:$0xff] %v194
  %199 = vst [vmem:[#allocation2 + $0xc8] sm:$0xff] %v195
  %200 = vst [vmem:[#allocation2 + $0xd0] sm:$0xff] %v196
  %201 = vst [vmem:[#allocation2 + $0xd8] sm:$0xff] %v197
  %202 = vrot.lane.b32.xlu0 %v14, 112
  %v203 = vpop.permute.xlu0 %202
  %204 = vrot.lane.b32.xlu0 %v16, 112
  %v205 = vpop.permute.xlu0 %204
  %206 = vrot.lane.b32.xlu0 %v15, 112
  %v207 = vpop.permute.xlu0 %206
  %208 = vrot.lane.b32.xlu0 %v17, 112
  %v209 = vpop.permute.xlu0 %208
  %vm210 = vcmp.lt.s32.totalorder %v31, 112
  %v211 = vsel %vm210, %v203, %v207
  %v212 = vsel %vm210, %v205, %v209
  %v213 = vsel %vm210, %v207, %v203
  %v214 = vsel %vm210, %v209, %v205
  %v215 = vlaneseq
  %v216 = vshrl.u32 %v215, 7
  %v217 = vsub.s32 7, %v216
  %v218 = vrot.slane %v18, %v217
  %v219 = vlaneseq
  %v220 = vshrl.u32 %v219, 7
  %v221 = vsub.s32 7, %v220
  %v222 = vrot.slane %v19, %v221
  %v223 = vmul.f32 %v211, %v218
  %v224 = vmul.f32 %v213, %v222
  %v225 = vmul.f32 %v212, %v218
  %v226 = vmul.f32 %v214, %v222
  %227 = vst [vmem:[#allocation2 + $0xe0] sm:$0xff] %v223
  %228 = vst [vmem:[#allocation2 + $0xe8] sm:$0xff] %v224
  %229 = vst [vmem:[#allocation2 + $0xf0] sm:$0xff] %v225
  %230 = vst [vmem:[#allocation2 + $0xf8] sm:$0xff] %v226
  %231 = vrot.lane.b32.xlu0 %v14, 111
  %v232 = vpop.permute.xlu0 %231
  %233 = vrot.lane.b32.xlu0 %v16, 111
  %v234 = vpop.permute.xlu0 %233
  %235 = vrot.lane.b32.xlu0 %v15, 111
  %v236 = vpop.permute.xlu0 %235
  %237 = vrot.lane.b32.xlu0 %v17, 111
  %v238 = vpop.permute.xlu0 %237
  %vm239 = vcmp.lt.s32.totalorder %v31, 111
  %v240 = vsel %vm239, %v232, %v236
  %v241 = vsel %vm239, %v234, %v238
  %v242 = vsel %vm239, %v236, %v232
  %v243 = vsel %vm239, %v238, %v234
  %v244 = vlaneseq
  %v245 = vshrl.u32 %v244, 7
  %v246 = vsub.s32 0, %v245
  %v247 = vrot.slane %v20, %v246
  %v248 = vlaneseq
  %v249 = vshrl.u32 %v248, 7
  %v250 = vsub.s32 0, %v249
  %v251 = vrot.slane %v21, %v250
  %v252 = vmul.f32 %v240, %v247
  %v253 = vmul.f32 %v242, %v251
  %v254 = vmul.f32 %v241, %v247
  %v255 = vmul.f32 %v243, %v251
  %256 = vst [vmem:[#allocation2 + $0x100] sm:$0xff] %v252
  %257 = vst [vmem:[#allocation2 + $0x108] sm:$0xff] %v253
  %258 = vst [vmem:[#allocation2 + $0x110] sm:$0xff] %v254
  %259 = vst [vmem:[#allocation2 + $0x118] sm:$0xff] %v255
  %v260 = vlaneseq
  %vm261 = vcmp.ge.s32.totalorder %v260, 0
  %vm262 = vcmp.lt.s32.totalorder %v260, 256
  %vm263 = vmand %vm261, %vm262
  %s264 = scalar_lea.vmem [#allocation2], 288
  %265 = vst.msk [vmem:[%s264] ss:$8 sm:$0x3] %vm263, 1.0
  %266 = vst.msk [vmem:[%s264] ss:$8 sm:$0x0] %vm263, 1.0
  %v267 = vld [vmem:[%s1] sm:$0xff]
  %v268 = vld [vmem:[%s1 + $0x8] sm:$0xff]
  %v269 = vld [vmem:[%s1 + $0x10] sm:$0xff]
  %v270 = vld [vmem:[%s1 + $0x18] sm:$0xff]
  %v271 = vld [vmem:[%s1 + $0x20] sm:$0xff]
  %v272 = vld [vmem:[%s1 + $0x28] sm:$0xff]
  %v273 = vld [vmem:[%s1 + $0x30] sm:$0xff]
  %v274 = vld [vmem:[%s1 + $0x38] sm:$0xff]
  %v275 = vld [vmem:[#allocation2] sm:$0xff]
  %v276 = vld [vmem:[#allocation2 + $0x8] sm:$0xff]
  %v277 = vld [vmem:[#allocation2 + $0x10] sm:$0xff]
  %v278 = vld [vmem:[#allocation2 + $0x18] sm:$0xff]
  %v279 = vld [vmem:[#allocation2 + $0x20] sm:$0xff]
  %v280 = vld [vmem:[#allocation2 + $0x28] sm:$0xff]
  %v281 = vld [vmem:[#allocation2 + $0x30] sm:$0xff]
  %v282 = vld [vmem:[#allocation2 + $0x38] sm:$0xff]
  %v283 = vld [vmem:[#allocation2 + $0x40] sm:$0xff]
  %v284 = vld [vmem:[#allocation2 + $0x48] sm:$0xff]
  %v285 = vld [vmem:[#allocation2 + $0x50] sm:$0xff]
  %v286 = vld [vmem:[#allocation2 + $0x58] sm:$0xff]
  %v287 = vld [vmem:[#allocation2 + $0x60] sm:$0xff]
  %v288 = vld [vmem:[#allocation2 + $0x68] sm:$0xff]
  %v289 = vld [vmem:[#allocation2 + $0x70] sm:$0xff]
  %v290 = vld [vmem:[#allocation2 + $0x78] sm:$0xff]
  %v291 = vld [vmem:[#allocation2 + $0x80] sm:$0xff]
  %v292 = vld [vmem:[#allocation2 + $0x88] sm:$0xff]
  %v293 = vld [vmem:[#allocation2 + $0x90] sm:$0xff]
  %v294 = vld [vmem:[#allocation2 + $0x98] sm:$0xff]
  %v295 = vld [vmem:[#allocation2 + $0xa0] sm:$0xff]
  %v296 = vld [vmem:[#allocation2 + $0xa8] sm:$0xff]
  %v297 = vld [vmem:[#allocation2 + $0xb0] sm:$0xff]
  %v298 = vld [vmem:[#allocation2 + $0xb8] sm:$0xff]
  %v299 = vld [vmem:[#allocation2 + $0xc0] sm:$0xff]
  %v300 = vld [vmem:[#allocation2 + $0xc8] sm:$0xff]
  %v301 = vld [vmem:[#allocation2 + $0xd0] sm:$0xff]
  %v302 = vld [vmem:[#allocation2 + $0xd8] sm:$0xff]
  %v303 = vld [vmem:[#allocation2 + $0xe0] sm:$0xff]
  %v304 = vld [vmem:[#allocation2 + $0xe8] sm:$0xff]
  %v305 = vld [vmem:[#allocation2 + $0xf0] sm:$0xff]
  %v306 = vld [vmem:[#allocation2 + $0xf8] sm:$0xff]
  %v307 = vld [vmem:[#allocation2 + $0x100] sm:$0xff]
  %v308 = vld [vmem:[#allocation2 + $0x108] sm:$0xff]
  %v309 = vld [vmem:[#allocation2 + $0x110] sm:$0xff]
  %v310 = vld [vmem:[#allocation2 + $0x118] sm:$0xff]
  %v311 = vld [vmem:[#allocation2 + $0x120] sm:$0x1]
  %v312 = vld [vmem:[#allocation2 + $0x128] sm:$0x1]
  %vm313 = vcmask 138240
  %v315 = vsel %vm313, %v268, 0
  %v318 = vsel %vm313, %v270, 0
  %v321 = vsel %vm313, %v272, 0
  %v324 = vsel %vm313, %v274, 0
  %vm326 = vcmask 1040384
  %v328 = vsel %vm326, %v311, 0
  %v331 = vsel %vm326, %v312, 0
  %333 = vmatprep.subr.mxu0 %v276
  %334 = vmatpush1.msra.mxu0 %v275
  %335 = vmatprep.subr.mxu0 %v278
  %336 = vmatpush1.msra.mxu0 %v277
  %337 = vmatprep.subr.mxu0 %v280
  %338 = vmatpush1.msra.mxu0 %v279
  %339 = vmatprep.subr.mxu0 %v282
  %340 = vmatpush1.msra.mxu0 %v281
  %341 = vmatprep.subr.mxu0 %v284
  %342 = vmatpush1.msra.mxu0 %v283
  %343 = vmatprep.subr.mxu0 %v286
  %344 = vmatpush1.msra.mxu0 %v285
  %345 = vmatprep.subr.mxu0 %v288
  %346 = vmatpush1.msra.mxu0 %v287
  %347 = vmatprep.subr.mxu0 %v290
  %348 = vmatpush1.msra.mxu0 %v289
  %349 = vmatprep.subr.mxu0 %v292
  %350 = vmatpush1.msra.mxu0 %v291
  %351 = vmatprep.subr.mxu0 %v294
  %352 = vmatpush1.msra.mxu0 %v293
  %353 = vmatprep.subr.mxu0 %v296
  %354 = vmatpush1.msra.mxu0 %v295
  %355 = vmatprep.subr.mxu0 %v298
  %356 = vmatpush1.msra.mxu0 %v297
  %357 = vmatprep.subr.mxu0 %v300
  %358 = vmatpush1.msra.mxu0 %v299
  %359 = vmatprep.subr.mxu0 %v302
  %360 = vmatpush1.msra.mxu0 %v301
  %361 = vmatprep.subr.mxu0 %v304
  %362 = vmatpush1.msra.mxu0 %v303
  %363 = vmatprep.subr.mxu0 %v306
  %364 = vmatpush1.msra.mxu0 %v305
  %365 = vmatprep.subr.mxu0 %v308
  %366 = vmatpush1.msra.mxu0 %v307
  %367 = vmatprep.subr.mxu0 %v310
  %368 = vmatpush1.msra.mxu0 %v309
  %369 = vmatprep.subr.mxu0 %v331
  %370 = vmatpush1.msra.mxu0 %v328
  %371 = vmatprep.subr.mxu0 0.0
  %372 = vmatpush1.msra.mxu0 0.0
  %373 = vmatprep.subr.mxu0 0.0
  %374 = vmatpush1.msra.mxu0 0.0
  %375 = vmatprep.subr.mxu0 0.0
  %376 = vmatpush1.msra.mxu0 0.0
  %377 = vmatprep.subr.mxu0 0.0
  %378 = vmatpush1.msra.mxu0 0.0
  %379 = vmatprep.subr.mxu0 0.0
  %380 = vmatpush1.msra.mxu0 0.0
  %381 = vmatprep.subr.mxu0 0.0
  %382 = vmatpush1.msra.mxu0 0.0
  %383 = vmatprep.subr.mxu0 0.0
  %384 = vmatpush1.msra.mxu0 0.0
  %385 = vmatprep.subr.mxu0 0.0
  %386 = vmatpush1.msra.mxu0 0.0
  %387 = vmatprep.subr.mxu0 0.0
  %388 = vmatpush1.msra.mxu0 0.0
  %389 = vmatprep.subr.mxu0 0.0
  %390 = vmatpush1.msra.mxu0 0.0
  %391 = vmatprep.subr.mxu0 0.0
  %392 = vmatpush1.msra.mxu0 0.0
  %393 = vmatprep.subr.mxu0 0.0
  %394 = vmatpush1.msra.mxu0 0.0
  %395 = vmatprep.subr.mxu0 0.0
  %396 = vmatpush1.msra.mxu0 0.0
  %397 = vmatprep.mubr.f32.mxu0 %v315
  %398 = vmatmul.mubr.f32.gmra.mrb[0].mxu0 %v267
  %v399 = vpop.f32.mrb[0].mxu0
  %v400 = vadd.f32 0.0, %v399
  %v401 = vpop.f32.mrb[0].mxu0
  %v402 = vadd.f32 0.0, %v401
  %403 = vmatprep.mubr.f32.mxu0 %v318
  %404 = vmatmul.mubr.f32.gmra.mrb[0].mxu0 %v269
  %v405 = vpop.f32.mrb[0].mxu0
  %v406 = vadd.f32 0.0, %v405
  %v407 = vpop.f32.mrb[0].mxu0
  %v408 = vadd.f32 0.0, %v407
  %409 = vmatprep.mubr.f32.mxu0 %v321
  %410 = vmatmul.mubr.f32.gmra.mrb[0].mxu0 %v271
  %v411 = vpop.f32.mrb[0].mxu0
  %v412 = vadd.f32 0.0, %v411
  %v413 = vpop.f32.mrb[0].mxu0
  %v414 = vadd.f32 0.0, %v413
  %415 = vmatprep.mubr.f32.mxu0 %v324
  %416 = vmatmul.mubr.f32.gmra.mrb[0].mxu0 %v273
  %v417 = vpop.f32.mrb[0].mxu0
  %v418 = vadd.f32 0.0, %v417
  %v419 = vpop.f32.mrb[0].mxu0
  %v420 = vadd.f32 0.0, %v419
  %421 = vdwg.mxu0
  %422 = vst [vmem:[%s3] sm:$0xff] %v400
  %423 = vst [vmem:[%s3 + $0x8] sm:$0xff] %v402
  %424 = vst [vmem:[%s3 + $0x10] sm:$0xff] %v406
  %425 = vst [vmem:[%s3 + $0x18] sm:$0xff] %v408
  %426 = vst [vmem:[%s3 + $0x20] sm:$0xff] %v412
  %427 = vst [vmem:[%s3 + $0x28] sm:$0xff] %v414
  %428 = vst [vmem:[%s3 + $0x30] sm:$0xff] %v418
  %429 = vst [vmem:[%s3 + $0x38] sm:$0xff] %v420
  // Predicated region
  $region14: #{spike_conv.1} parent=0 // pred_check
    _
  $region15: #{spike_conv.1} parent=0 // pred_check_branch
    %431 = sbr.rel (0) target = $region17
  $region16: #{spike_conv.1} parent=0 // pred_region
    _
  $region17: #{spike_conv.1} parent=0 // pred_fallthru
    _
  // Predicated region
  $region18: #{spike_conv.1} parent=0 // pred_check
    _
  $region19: #{spike_conv.1} parent=0 // pred_check_branch
    %433 = sbr.rel (0) target = $region21
  $region20: #{spike_conv.1} parent=0 // pred_region
    _
  $region21: #{spike_conv.1} parent=0 // pred_fallthru
    _

</llo_original>
